<compile_context>
chip_gen: v5e
topology: v5e:2x2
jax: 0.10.0
libtpu: 0.0.40
codegen_flags: <defaults>
</compile_context>

<pallas_src>
import functools
import math

import jax
import jax.numpy as jnp
from jax import lax
from jax.experimental import pallas as pl
from jax.experimental.pallas import tpu as pltpu


def _round_up(v, m):
    return ((v + m - 1) // m) * m


_PAD_MODE = {"zero": "constant", "reflect": "reflect", "replicate": "edge"}


# --------------------------------------------------------------------------
# Kernel 1: InstanceNorm2d statistics  ->  per-(b, c) mean and 1/sqrt(var+eps)
# --------------------------------------------------------------------------
def _stats_kernel(x_ref, mean_ref, istd_ref):
    x = x_ref[...]                                           # (R, H*W) f32
    n = x.shape[1]
    mu = jnp.sum(x, axis=1, keepdims=True) * (1.0 / n)
    d = x - mu
    var = jnp.sum(d * d, axis=1, keepdims=True) * (1.0 / n)  # biased, as torch
    mean_ref[...] = mu
    istd_ref[...] = lax.rsqrt(var + 1e-5)                    # InstanceNorm2d eps


def _instance_stats(x):
    """x: (B, C, H, W) f32 -> (mean, inv_std), each (B, C) f32."""
    B, C, H, W = x.shape
    BC = B * C
    HW = H * W
    R = min(256, _round_up(BC, 8))          # big row blocks: amortize grid-step cost
    BCp = _round_up(BC, R)
    xf = x.reshape(BC, HW)
    if BCp != BC:
        xf = jnp.pad(xf, ((0, BCp - BC), (0, 0)))
    mean, istd = pl.pallas_call(
        _stats_kernel,
        out_shape=(jax.ShapeDtypeStruct((BCp, 1), jnp.float32),
                   jax.ShapeDtypeStruct((BCp, 1), jnp.float32)),
        grid=(BCp // R,),
        in_specs=[pl.BlockSpec((R, HW), lambda i: (i, 0))],
        out_specs=(pl.BlockSpec((R, 1), lambda i: (i, 0)),
                   pl.BlockSpec((R, 1), lambda i: (i, 0))),
        compiler_params=pltpu.CompilerParams(
            dimension_semantics=("parallel",)),
    )(xf)
    return mean[:BC].reshape(B, C), istd[:BC].reshape(B, C)


# --------------------------------------------------------------------------
# Kernel 2: fused (1/std scale + LeakyReLU) + Conv2d over spatial tiles
# --------------------------------------------------------------------------
def _make_conv_kernel_taps(taps, cin_p, m_tile, lt):
    """Default path: K*K accumulating matmuls, no patch matrix."""

    def kernel(x_ref, istd_ref, w_ref, b_ref, o_ref, act_ref):
        # x_ref:    (1, SS*Cin_p, Lin)   bf16 centered phase view (per-batch, resident)
        # istd_ref: (1, SS*Cin_p, 1)     f32  per-batch 1/sqrt(var+eps)
        # w_ref:    (KK, Cout_p, Cin_p)  bf16 batch-invariant weights (grid-resident)
        # b_ref:    (Cout_p, 1)          f32
        # o_ref:    (1, Cout_p, Mt)      f32  lane-dense output tile
        # act_ref:  (SS*Cin_p, Lt)       bf16 pre-activated tile + halo scratch
        j = pl.program_id(1)
        start = pl.multiple_of(j * m_tile, 128)
        # Pre-activate ONCE per tile (scale + LeakyReLU + casts hoisted out of
        # the K*K tap loop).  f32 math: required on v5e (no bf16 VPU).
        # TODO(synk): on v6e/v7x this could run in packed bf16 (2x VALU).
        t = x_ref[0, :, pl.ds(start, lt)].astype(jnp.float32)
        t = t * istd_ref[0]                                  # broadcast (rows, 1)
        t = jnp.where(t >= 0.0, t, 0.2 * t)                  # LeakyReLU(0.2)
        act_ref[...] = t.astype(jnp.bfloat16)
        # K*K accumulating MXU matmuls; the tap shift is folded into the slice
        # of the pre-activated scratch (no patch matrix, no extra vst/vld).
        acc = None
        for kk, (row0, off) in enumerate(taps):              # unrolled, static
            a = act_ref[pl.ds(row0, cin_p), pl.ds(off, m_tile)]
            d = jnp.dot(w_ref[kk], a, preferred_element_type=jnp.float32)
            acc = d if acc is None else acc + d
        o_ref[0] = acc + b_ref[...]                          # bias in f32

    return kernel


def _make_conv_kernel_patch(taps, cin_p, m_tile, lt):
    """Patch-matrix path for tiny Cin_p: one deep contraction on the MXU."""

    def kernel(x_ref, istd_ref, w_ref, b_ref, o_ref, act_ref, p_ref):
        # w_ref: (Cout_p, KK*Cin_p) bf16;  p_ref: (KK*Cin_p, Mt) bf16 scratch.
        j = pl.program_id(1)
        start = pl.multiple_of(j * m_tile, 128)
        t = x_ref[0, :, pl.ds(start, lt)].astype(jnp.float32)
        t = t * istd_ref[0]
        t = jnp.where(t >= 0.0, t, 0.2 * t)
        act_ref[...] = t.astype(jnp.bfloat16)
        for kk, (row0, off) in enumerate(taps):              # pure bf16 copies
            p_ref[kk * cin_p:(kk + 1) * cin_p, :] = \
                act_ref[pl.ds(row0, cin_p), pl.ds(off, m_tile)]
        acc = jnp.dot(w_ref[...], p_ref[...],
                      preferred_element_type=jnp.float32)
        o_ref[0] = acc + b_ref[...]

    return kernel


@functools.partial(jax.jit, static_argnames=("kernel_size", "stride", "padding",
                                             "padding_type", "m_tile",
                                             "patch_gather"))
def norm_act_conv(x, w, b, *, kernel_size, stride, padding,
                  padding_type="zero", m_tile=512, patch_gather=None):
    """NormActConv forward: InstanceNorm2d(affine=False) -> LeakyReLU(0.2) -> Conv2d.

    x: (B, Cin, H, W) f32,  w: (Cout, Cin, K, K),  b: (Cout,)
    """
    # TODO(synk): norm_layer/act_layer are fixed to InstanceNorm2d + LeakyReLU(0.2)
    # (the configuration used by Discriminator_Multi_light); arbitrary layer
    # arguments are not implemented.
    B, Cin, H, W = x.shape
    Cout = w.shape[0]
    K, s, p = kernel_size, stride, padding

    OH = (H + 2 * p - K) // s + 1
    OW = (W + 2 * p - K) // s + 1
    D = (K - 1) // s                        # max phase row/col offset per tap
    Hq, Wq = OH + D, OW + D                 # padded output grid (junk cols/rows)
    M = OH * Wq                             # flat (padded-width) output length
    Mt = min(_round_up(M, 128), _round_up(m_tile, 128))   # lane-dense tile
    NT = pl.cdiv(M, Mt)
    Mp = NT * Mt
    off_max = D * Wq + D                    # largest tap offset
    halo = _round_up(off_max, 128) if off_max else 0
    Lt = Mt + halo                          # pre-activated scratch width
    Lin = Mp + halo                         # flat phase length incl. halo slop
    Cin_p = _round_up(Cin, 16)              # bf16 sublane packing
    Cout_p = _round_up(Cout, 8)
    KK, SS = K * K, s * s
    use_patch = (Cin_p < 128) if patch_gather is None else bool(patch_gather)

    # ---- InstanceNorm statistics (Pallas) --------------------------------
    mean, istd = _instance_stats(x)

    # ---- layout prep: one reshape/transpose space-to-depth pass ----------
    # Mean-centering folded into the padding: zero-padding (x - mean) makes
    # the post-norm-act value of padded cells exactly 0, matching PyTorch's
    # zero-padding of the normalized/activated tensor.  For reflect /
    # replicate, padding (x - mean) is identical to padding x then centering.
    xc = x - mean[:, :, None, None]
    xp = jnp.pad(xc, ((0, 0), (0, 0), (p, p), (p, p)),
                 mode=_PAD_MODE[padding_type])
    Hp, Wp = H + 2 * p, W + 2 * p
    H2, W2 = s * Hq, s * Wq                                  # always >= Hp, Wp
    xpp = jnp.pad(xp, ((0, 0), (0, 0), (0, H2 - Hp), (0, W2 - Wp)))
    # Space-to-depth by the stride: phase (a, c) holds xpp[..., a::s, c::s],
    # so every conv tap becomes a contiguous flat slice inside the kernel.
    xs = xpp.reshape(B, Cin, Hq, s, Wq, s)
    xs = jnp.transpose(xs, (0, 3, 5, 1, 2, 4)).reshape(B, SS, Cin, Hq * Wq)
    xs = jnp.pad(xs, ((0, 0), (0, 0), (0, Cin_p - Cin), (0, Lin - Hq * Wq)))
    xs = xs.reshape(B, SS * Cin_p, Lin).astype(jnp.bfloat16)

    # ---- per-batch 1/std vector (applied to the activation in-kernel) -----
    istd_v = jnp.pad(istd, ((0, 0), (0, Cin_p - Cin)))       # (B, Cin_p)
    istd_v = jnp.tile(istd_v, (1, SS))[:, :, None]           # (B, SS*Cin_p, 1)

    # ---- batch-invariant weights (resident in VMEM for the whole grid) ----
    wk = jnp.transpose(w, (2, 3, 0, 1)).reshape(KK, Cout, Cin)
    wk = jnp.pad(wk, ((0, 0), (0, Cout_p - Cout), (0, Cin_p - Cin)))
    if use_patch:
        wq = jnp.transpose(wk, (1, 0, 2)).reshape(Cout_p, KK * Cin_p)
        wq = wq.astype(jnp.bfloat16)
        w_spec = pl.BlockSpec((Cout_p, KK * Cin_p), lambda bi, ji: (0, 0))
    else:
        wq = wk.astype(jnp.bfloat16)                         # (KK, Cout_p, Cin_p)
        w_spec = pl.BlockSpec((KK, Cout_p, Cin_p), lambda bi, ji: (0, 0, 0))
    bb = jnp.pad(b.astype(jnp.float32), (0, Cout_p - Cout)).reshape(Cout_p, 1)

    # ---- static tap table: (phase-block row offset, flat offset) ----------
    taps = []
    for kh in range(K):
        for kw in range(K):
            pidx = (kh % s) * s + (kw % s)
            taps.append((pidx * Cin_p, (kh // s) * Wq + (kw // s)))
    taps = tuple(taps)

    if use_patch:
        kernel = _make_conv_kernel_patch(taps, Cin_p, Mt, Lt)
    else:
        kernel = _make_conv_kernel_taps(taps, Cin_p, Mt, Lt)

    scratch = [pltpu.VMEM((SS * Cin_p, Lt), jnp.bfloat16)]
    if use_patch:
        scratch.append(pltpu.VMEM((KK * Cin_p, Mt), jnp.bfloat16))

    # Explicit VMEM budget sized to the chosen tiles (+ headroom), clamped to
    # stay safe on v7x (64 MiB physical per TensorCore).
    est = (2 * SS * Cin_p * Lin * 2          # x double buffer (bf16)
           + 2 * SS * Cin_p * 4              # istd
           + 2 * KK * Cout_p * Cin_p * 2     # weights
           + 2 * Cout_p * 4                  # bias
           + 2 * Cout_p * Mt * 4             # output double buffer (f32)
           + SS * Cin_p * Lt * 2             # pre-activated scratch
           + Cout_p * Mt * 4)                # accumulator temp
    if use_patch:
        est += KK * Cin_p * Mt * 2
    vmem_limit = int(min(max(2 * est, 32 * 2 ** 20), 64 * 2 ** 20))

    out = pl.pallas_call(
        kernel,
        out_shape=jax.ShapeDtypeStruct((B, Cout_p, Mp), jnp.float32),
        grid=(B, NT),
        in_specs=[
            # Full per-batch block: index unchanged across the spatial axis ->
            # DMA'd once per batch, resident while its tiles are processed.
            pl.BlockSpec((1, SS * Cin_p, Lin), lambda bi, ji: (bi, 0, 0)),
            pl.BlockSpec((1, SS * Cin_p, 1), lambda bi, ji: (bi, 0, 0)),
            w_spec,                                          # constant index
            pl.BlockSpec((Cout_p, 1), lambda bi, ji: (0, 0)),
        ],
        out_specs=pl.BlockSpec((1, Cout_p, Mt), lambda bi, ji: (bi, 0, ji)),
        scratch_shapes=scratch,
        compiler_params=pltpu.CompilerParams(
            dimension_semantics=("parallel", "parallel"),
            vmem_limit_bytes=vmem_limit),
    )(xs, istd_v, wq, bb)

    # Drop channel padding, junk columns and lane padding.
    # TODO(synk): when feeding another bf16 NormActConv stage, the kernel could
    # emit bf16 and this slice could be fused into the next layer's prep.
    out = out[:, :Cout, :M].reshape(B, Cout, OH, Wq)[:, :, :, :OW]
    return out


# --------------------------------------------------------------- parameters --
def _spectral_normalize(w, iters=30):
    # TODO(synk): nn.utils.spectral_norm keeps power-iteration buffers that are
    # updated once per training forward; here sigma is computed to convergence
    # once at init (equivalent for a fixed weight / eval mode).
    w2d = w.reshape(w.shape[0], -1)
    v = jnp.ones((w2d.shape[1],), jnp.float32)
    v = v / jnp.sqrt(jnp.sum(v * v))
    u = w2d @ v
    for _ in range(iters):
        u = w2d @ v
        u = u / (jnp.sqrt(jnp.sum(u * u)) + 1e-12)
        v = w2d.T @ u
        v = v / (jnp.sqrt(jnp.sum(v * v)) + 1e-12)
    sigma = u @ (w2d @ v)
    return w / sigma


def init_norm_act_conv(key, n_in, n_out, kernel_size, sn=False):
    kw, kb = jax.random.split(key)
    fan_in = n_in * kernel_size * kernel_size
    w = jax.random.normal(kw, (n_out, n_in, kernel_size, kernel_size),
                          jnp.float32) / math.sqrt(fan_in)
    b = jax.random.normal(kb, (n_out,), jnp.float32) * 0.01
    if sn:
        w = _spectral_normalize(w)
    return w, b


# ---------------------------------------------------------------- reference --
def _reference(x, w, b, *, kernel_size, stride, padding, padding_type):
    mean = jnp.mean(x, axis=(2, 3), keepdims=True)
    var = jnp.mean((x - mean) ** 2, axis=(2, 3), keepdims=True)
    y = (x - mean) * lax.rsqrt(var + 1e-5)
    y = jnp.where(y >= 0, y, 0.2 * y)
    pds = ((0, 0), (0, 0), (padding, padding), (padding, padding))
    yp = jnp.pad(y, pds, mode=_PAD_MODE[padding_type])
    out = lax.conv_general_dilated(
        yp, w, (stride, stride), "VALID",
        dimension_numbers=("NCHW", "OIHW", "NCHW"))
    return out + b.reshape(1, -1, 1, 1)


# --------------------------------------------------------------------- main --
if __name__ == "__main__":
    key = jax.random.PRNGKey(0)
    kx, k1, k2, k3, k4 = jax.random.split(key, 5)

    B, Cin, H, W = 2, 4, 16, 16
    x = jax.random.normal(kx, (B, Cin, H, W), jnp.float32)

    configs = [  # (cout, k, stride, pad, ptype, sn, m_tile, patch_gather)
        (8, 3, 2, 1, "zero", True, 512, None),       # stride-2 block, patch path (auto)
        (6, 3, 1, 1, "reflect", False, 128, False),  # stride-1, multi-tile, per-tap matmuls
        (8, 1, 1, 0, "zero", True, 512, None),       # 1x1 conv (ASPP-style branch)
        (16, 3, 2, 1, "replicate", False, 128, False),  # replicate pad, per-tap matmuls
    ]
    for (cout, k, s, p, ptype, sn, mt, pg), kk in zip(configs, [k1, k2, k3, k4]):
        w, b = init_norm_act_conv(kk, Cin, cout, k, sn=sn)
        y = norm_act_conv(x, w, b, kernel_size=k, stride=s, padding=p,
                          padding_type=ptype, m_tile=mt, patch_gather=pg)
        y = jax.block_until_ready(y)
        oh = (H + 2 * p - k) // s + 1
        assert y.shape == (B, cout, oh, oh), y.shape
        y_ref = _reference(x, w, b, kernel_size=k, stride=s, padding=p,
                           padding_type=ptype)
        err = float(jnp.max(jnp.abs(y - y_ref)))
        assert err < 5e-2, (
            f"max abs err {err} for config {(cout, k, s, p, ptype, sn, mt, pg)}")

    print("KERNEL_OK")
</pallas_src>

<mosaic_0001>
module attributes {stable_mosaic.version = 11 : i64} {
  func.func @_stats_kernel(%arg0: i32, %arg1: memref<8x256xf32, #tpu.memory_space<vmem>>, %arg2: memref<8x1xf32, #tpu.memory_space<vmem>>, %arg3: memref<8x1xf32, #tpu.memory_space<vmem>>) attributes {dimension_semantics = [#tpu.dimension_semantics<parallel>], iteration_bounds = array<i64: 1>, scalar_prefetch = 0 : i64, scratch_operands = 0 : i64, tpu.core_type = #tpu.core_type<tc>, window_params = [{transform_indices = @transform_0, window_bounds = array<i64: 8, 256>}, {transform_indices = @transform_1, window_bounds = array<i64: 8, 1>}, {transform_indices = @transform_2, window_bounds = array<i64: 8, 1>}]} {
    %c0 = arith.constant 0 : index
    %c0_0 = arith.constant 0 : index
    %0 = vector.load %arg1[%c0, %c0_0] : memref<8x256xf32, #tpu.memory_space<vmem>>, vector<8x256xf32>
    %cst = arith.constant dense<0.000000e+00> : vector<8xf32>
    %1 = vector.multi_reduction <add>, %0, %cst [1] : vector<8x256xf32> to vector<8xf32>
    %2 = vector.shape_cast %1 : vector<8xf32> to vector<8x1xf32>
    %cst_1 = arith.constant 3.906250e-03 : f32
    %3 = vector.broadcast %cst_1 : f32 to vector<8x1xf32>
    %4 = arith.mulf %2, %3 : vector<8x1xf32>
    %5 = vector.broadcast %4 : vector<8x1xf32> to vector<8x256xf32>
    %6 = arith.subf %0, %5 : vector<8x256xf32>
    %7 = arith.mulf %6, %6 : vector<8x256xf32>
    %cst_2 = arith.constant dense<0.000000e+00> : vector<8xf32>
    %8 = vector.multi_reduction <add>, %7, %cst_2 [1] : vector<8x256xf32> to vector<8xf32>
    %9 = vector.shape_cast %8 : vector<8xf32> to vector<8x1xf32>
    %cst_3 = arith.constant 3.906250e-03 : f32
    %10 = vector.broadcast %cst_3 : f32 to vector<8x1xf32>
    %11 = arith.mulf %9, %10 : vector<8x1xf32>
    %c0_4 = arith.constant 0 : index
    %c0_5 = arith.constant 0 : index
    %12 = vector.load %arg2[%c0_4, %c0_5] : memref<8x1xf32, #tpu.memory_space<vmem>>, vector<8x1xf32>
    tpu.vector_store %arg2[%c0_4, %c0_5], %4 {strides = array<i32>} : memref<8x1xf32, #tpu.memory_space<vmem>>, vector<8x1xf32>,
    %cst_6 = arith.constant 9.99999974E-6 : f32
    %13 = vector.broadcast %cst_6 : f32 to vector<8x1xf32>
    %14 = arith.addf %11, %13 : vector<8x1xf32>
    %15 = math.rsqrt %14 : vector<8x1xf32>
    %c0_7 = arith.constant 0 : index
    %c0_8 = arith.constant 0 : index
    %16 = vector.load %arg3[%c0_7, %c0_8] : memref<8x1xf32, #tpu.memory_space<vmem>>, vector<8x1xf32>
    tpu.vector_store %arg3[%c0_7, %c0_8], %15 {strides = array<i32>} : memref<8x1xf32, #tpu.memory_space<vmem>>, vector<8x1xf32>,
    return
  }
  func.func @transform_0(%arg0: i32) -> (i32, i32) {
    %c0_i32 = arith.constant 0 : i32
    %c0_i32_0 = arith.constant 0 : i32
    return %arg0, %c0_i32 : i32, i32
  }
  func.func @transform_1(%arg0: i32) -> (i32, i32) {
    %c0_i32 = arith.constant 0 : i32
    %c0_i32_0 = arith.constant 0 : i32
    return %arg0, %c0_i32 : i32, i32
  }
  func.func @transform_2(%arg0: i32) -> (i32, i32) {
    %c0_i32 = arith.constant 0 : i32
    %c0_i32_0 = arith.constant 0 : i32
    return %arg0, %c0_i32 : i32, i32
  }
}

module attributes {stable_mosaic.version = 11 : i64} {
  func.func @kernel(%arg0: i32, %arg1: i32, %arg2: memref<1x64x256xbf16, #tpu.memory_space<vmem>>, %arg3: memref<1x64x1xf32, #tpu.memory_space<vmem>>, %arg4: memref<8x144xbf16, #tpu.memory_space<vmem>>, %arg5: memref<8x1xf32, #tpu.memory_space<vmem>>, %arg6: memref<1x8x128xf32, #tpu.memory_space<vmem>>, %arg7: memref<64x256xbf16, #tpu.memory_space<vmem>>, %arg8: memref<144x128xbf16, #tpu.memory_space<vmem>>) attributes {dimension_semantics = [#tpu.dimension_semantics<parallel>, #tpu.dimension_semantics<parallel>], iteration_bounds = array<i64: 2, 1>, scalar_prefetch = 0 : i64, scratch_operands = 2 : i64, tpu.core_type = #tpu.core_type<tc>, window_params = [{transform_indices = @transform_0, window_bounds = array<i64: 1, 64, 256>}, {transform_indices = @transform_1, window_bounds = array<i64: 1, 64, 1>}, {pipeline_mode = #tpu.pipeline_mode<synchronous>, transform_indices = @transform_2, window_bounds = array<i64: 8, 144>}, {pipeline_mode = #tpu.pipeline_mode<synchronous>, transform_indices = @transform_3, window_bounds = array<i64: 8, 1>}, {transform_indices = @transform_4, window_bounds = array<i64: 1, 8, 128>}]} {
    %c128_i32 = arith.constant 128 : i32
    %0 = arith.muli %arg1, %c128_i32 : i32
    %1 = tpu.assume_multiple %0, 128 : i32
    %c0 = arith.constant 0 : index
    %c0_0 = arith.constant 0 : index
    %2 = arith.index_cast %1 : i32 to index
    %3 = vector.load %arg2[%c0, %c0_0, %2] : memref<1x64x256xbf16, #tpu.memory_space<vmem>>, vector<1x64x256xbf16>
    %4 = vector.shape_cast %3 : vector<1x64x256xbf16> to vector<64x256xbf16>
    %5 = arith.extf %4 : vector<64x256xbf16> to vector<64x256xf32>
    %c0_1 = arith.constant 0 : index
    %c0_2 = arith.constant 0 : index
    %c0_3 = arith.constant 0 : index
    %6 = vector.load %arg3[%c0_1, %c0_2, %c0_3] : memref<1x64x1xf32, #tpu.memory_space<vmem>>, vector<1x64x1xf32>
    %7 = vector.shape_cast %6 : vector<1x64x1xf32> to vector<64x1xf32>
    %8 = vector.broadcast %7 : vector<64x1xf32> to vector<64x256xf32>
    %9 = arith.mulf %5, %8 : vector<64x256xf32>
    %cst = arith.constant 0.000000e+00 : f32
    %10 = vector.broadcast %cst : f32 to vector<64x256xf32>
    %11 = arith.cmpf oge, %9, %10 : vector<64x256xf32>
    %cst_4 = arith.constant 2.000000e-01 : f32
    %12 = vector.broadcast %cst_4 : f32 to vector<64x256xf32>
    %13 = arith.mulf %12, %9 : vector<64x256xf32>
    %14 = arith.select %11, %9, %13 : vector<64x256xi1>, vector<64x256xf32>
    %15 = arith.truncf %14 : vector<64x256xf32> to vector<64x256xbf16>
    %c0_5 = arith.constant 0 : index
    %c0_6 = arith.constant 0 : index
    %16 = vector.load %arg7[%c0_5, %c0_6] : memref<64x256xbf16, #tpu.memory_space<vmem>>, vector<64x256xbf16>
    tpu.vector_store %arg7[%c0_5, %c0_6], %15 {strides = array<i32>} : memref<64x256xbf16, #tpu.memory_space<vmem>>, vector<64x256xbf16>,
    %c0_7 = arith.constant 0 : index
    %c0_8 = arith.constant 0 : index
    %17 = vector.load %arg7[%c0_7, %c0_8] : memref<64x256xbf16, #tpu.memory_space<vmem>>, vector<16x128xbf16>
    %c0_9 = arith.constant 0 : index
    %c0_10 = arith.constant 0 : index
    %18 = vector.load %arg8[%c0_9, %c0_10] : memref<144x128xbf16, #tpu.memory_space<vmem>>, vector<16x128xbf16>
    tpu.vector_store %arg8[%c0_9, %c0_10], %17 {strides = array<i32>} : memref<144x128xbf16, #tpu.memory_space<vmem>>, vector<16x128xbf16>,
    %c16 = arith.constant 16 : index
    %c0_11 = arith.constant 0 : index
    %19 = vector.load %arg7[%c16, %c0_11] : memref<64x256xbf16, #tpu.memory_space<vmem>>, vector<16x128xbf16>
    %c16_12 = arith.constant 16 : index
    %c0_13 = arith.constant 0 : index
    %20 = vector.load %arg8[%c16_12, %c0_13] : memref<144x128xbf16, #tpu.memory_space<vmem>>, vector<16x128xbf16>
    tpu.vector_store %arg8[%c16_12, %c0_13], %19 {strides = array<i32>} : memref<144x128xbf16, #tpu.memory_space<vmem>>, vector<16x128xbf16>,
    %c0_14 = arith.constant 0 : index
    %c1 = arith.constant 1 : index
    %21 = vector.load %arg7[%c0_14, %c1] : memref<64x256xbf16, #tpu.memory_space<vmem>>, vector<16x128xbf16>
    %c32 = arith.constant 32 : index
    %c0_15 = arith.constant 0 : index
    %22 = vector.load %arg8[%c32, %c0_15] : memref<144x128xbf16, #tpu.memory_space<vmem>>, vector<16x128xbf16>
    tpu.vector_store %arg8[%c32, %c0_15], %21 {strides = array<i32>} : memref<144x128xbf16, #tpu.memory_space<vmem>>, vector<16x128xbf16>,
    %c32_16 = arith.constant 32 : index
    %c0_17 = arith.constant 0 : index
    %23 = vector.load %arg7[%c32_16, %c0_17] : memref<64x256xbf16, #tpu.memory_space<vmem>>, vector<16x128xbf16>
    %c48 = arith.constant 48 : index
    %c0_18 = arith.constant 0 : index
    %24 = vector.load %arg8[%c48, %c0_18] : memref<144x128xbf16, #tpu.memory_space<vmem>>, vector<16x128xbf16>
    tpu.vector_store %arg8[%c48, %c0_18], %23 {strides = array<i32>} : memref<144x128xbf16, #tpu.memory_space<vmem>>, vector<16x128xbf16>,
    %c48_19 = arith.constant 48 : index
    %c0_20 = arith.constant 0 : index
    %25 = vector.load %arg7[%c48_19, %c0_20] : memref<64x256xbf16, #tpu.memory_space<vmem>>, vector<16x128xbf16>
    %c64 = arith.constant 64 : index
    %c0_21 = arith.constant 0 : index
    %26 = vector.load %arg8[%c64, %c0_21] : memref<144x128xbf16, #tpu.memory_space<vmem>>, vector<16x128xbf16>
    tpu.vector_store %arg8[%c64, %c0_21], %25 {strides = array<i32>} : memref<144x128xbf16, #tpu.memory_space<vmem>>, vector<16x128xbf16>,
    %c32_22 = arith.constant 32 : index
    %c1_23 = arith.constant 1 : index
    %27 = vector.load %arg7[%c32_22, %c1_23] : memref<64x256xbf16, #tpu.memory_space<vmem>>, vector<16x128xbf16>
    %c80 = arith.constant 80 : index
    %c0_24 = arith.constant 0 : index
    %28 = vector.load %arg8[%c80, %c0_24] : memref<144x128xbf16, #tpu.memory_space<vmem>>, vector<16x128xbf16>
    tpu.vector_store %arg8[%c80, %c0_24], %27 {strides = array<i32>} : memref<144x128xbf16, #tpu.memory_space<vmem>>, vector<16x128xbf16>,
    %c0_25 = arith.constant 0 : index
    %c9 = arith.constant 9 : index
    %29 = vector.load %arg7[%c0_25, %c9] : memref<64x256xbf16, #tpu.memory_space<vmem>>, vector<16x128xbf16>
    %c96 = arith.constant 96 : index
    %c0_26 = arith.constant 0 : index
    %30 = vector.load %arg8[%c96, %c0_26] : memref<144x128xbf16, #tpu.memory_space<vmem>>, vector<16x128xbf16>
    tpu.vector_store %arg8[%c96, %c0_26], %29 {strides = array<i32>} : memref<144x128xbf16, #tpu.memory_space<vmem>>, vector<16x128xbf16>,
    %c16_27 = arith.constant 16 : index
    %c9_28 = arith.constant 9 : index
    %31 = vector.load %arg7[%c16_27, %c9_28] : memref<64x256xbf16, #tpu.memory_space<vmem>>, vector<16x128xbf16>
    %c112 = arith.constant 112 : index
    %c0_29 = arith.constant 0 : index
    %32 = vector.load %arg8[%c112, %c0_29] : memref<144x128xbf16, #tpu.memory_space<vmem>>, vector<16x128xbf16>
    tpu.vector_store %arg8[%c112, %c0_29], %31 {strides = array<i32>} : memref<144x128xbf16, #tpu.memory_space<vmem>>, vector<16x128xbf16>,
    %c0_30 = arith.constant 0 : index
    %c10 = arith.constant 10 : index
    %33 = vector.load %arg7[%c0_30, %c10] : memref<64x256xbf16, #tpu.memory_space<vmem>>, vector<16x128xbf16>
    %c128 = arith.constant 128 : index
    %c0_31 = arith.constant 0 : index
    %34 = vector.load %arg8[%c128, %c0_31] : memref<144x128xbf16, #tpu.memory_space<vmem>>, vector<16x128xbf16>
    tpu.vector_store %arg8[%c128, %c0_31], %33 {strides = array<i32>} : memref<144x128xbf16, #tpu.memory_space<vmem>>, vector<16x128xbf16>,
    %c0_32 = arith.constant 0 : index
    %c0_33 = arith.constant 0 : index
    %35 = vector.load %arg4[%c0_32, %c0_33] : memref<8x144xbf16, #tpu.memory_space<vmem>>, vector<8x144xbf16>
    %c0_34 = arith.constant 0 : index
    %c0_35 = arith.constant 0 : index
    %36 = vector.load %arg8[%c0_34, %c0_35] : memref<144x128xbf16, #tpu.memory_space<vmem>>, vector<144x128xbf16>
    %cst_36 = arith.constant dense<0.000000e+00> : vector<8x128xf32>
    %37 = tpu.matmul %35, %36, %cst_36 {dimension_numbers = #tpu.dot_dimension_numbers<[1], [0], [0], [1], [0, 0, 1, 1], [], []>} : vector<8x144xbf16>, vector<144x128xbf16>, vector<8x128xf32> -> vector<8x128xf32>
    %c0_37 = arith.constant 0 : index
    %c0_38 = arith.constant 0 : index
    %38 = vector.load %arg5[%c0_37, %c0_38] : memref<8x1xf32, #tpu.memory_space<vmem>>, vector<8x1xf32>
    %39 = vector.broadcast %38 : vector<8x1xf32> to vector<8x128xf32>
    %40 = arith.addf %37, %39 : vector<8x128xf32>
    %c0_39 = arith.constant 0 : index
    %c0_40 = arith.constant 0 : index
    %c0_41 = arith.constant 0 : index
    %41 = vector.load %arg6[%c0_39, %c0_40, %c0_41] : memref<1x8x128xf32, #tpu.memory_space<vmem>>, vector<1x8x128xf32>
    %42 = vector.shape_cast %41 : vector<1x8x128xf32> to vector<8x128xf32>
    %43 = vector.shape_cast %40 : vector<8x128xf32> to vector<1x8x128xf32>
    tpu.vector_store %arg6[%c0_39, %c0_40, %c0_41], %43 {strides = array<i32>} : memref<1x8x128xf32, #tpu.memory_space<vmem>>, vector<1x8x128xf32>,
    return
  }
  func.func @transform_0(%arg0: i32, %arg1: i32) -> (i32, i32, i32) {
    %c0_i32 = arith.constant 0 : i32
    %c0_i32_0 = arith.constant 0 : i32
    %c0_i32_1 = arith.constant 0 : i32
    return %arg0, %c0_i32, %c0_i32_0 : i32, i32, i32
  }
  func.func @transform_1(%arg0: i32, %arg1: i32) -> (i32, i32, i32) {
    %c0_i32 = arith.constant 0 : i32
    %c0_i32_0 = arith.constant 0 : i32
    %c0_i32_1 = arith.constant 0 : i32
    return %arg0, %c0_i32, %c0_i32_0 : i32, i32, i32
  }
  func.func @transform_2(%arg0: i32, %arg1: i32) -> (i32, i32) {
    %c0_i32 = arith.constant 0 : i32
    %c0_i32_0 = arith.constant 0 : i32
    %c0_i32_1 = arith.constant 0 : i32
    return %c0_i32, %c0_i32_0 : i32, i32
  }
  func.func @transform_3(%arg0: i32, %arg1: i32) -> (i32, i32) {
    %c0_i32 = arith.constant 0 : i32
    %c0_i32_0 = arith.constant 0 : i32
    %c0_i32_1 = arith.constant 0 : i32
    return %c0_i32, %c0_i32_0 : i32, i32
  }
  func.func @transform_4(%arg0: i32, %arg1: i32) -> (i32, i32, i32) {
    %c0_i32 = arith.constant 0 : i32
    %c0_i32_0 = arith.constant 0 : i32
    return %arg0, %c0_i32, %arg1 : i32, i32, i32
  }
}

</mosaic_0001>

<llo_original>
// kernel: sub.5
$region0: #{sub.5}
  %s0 = inlined_call_operand.vmem [shape: f32[8], index: 0, kind: input, shape index: {}]
  %s1 = inlined_call_operand.vmem [shape: f32[2,4], index: 1, kind: output, shape index: {}]
  $region1: #{sub.5} parent=0
    #allocation0 [shape = 'u8[4096]{0}', space=vmem, size = 0x1000, scoped, tag = 'scoped mem for output reshape']
    #allocation1 [shape = 'u8[4096]{0}', space=vmem, size = 0x1000, scoped, tag = 'scoped mem for input reshape']
    %s3 = ssub.s32 2, 1
    %v4 = vld [vmem:[%s0] sm:%s3]
    %5 = vst [vmem:[#allocation1] sm:%s3] %v4
    %v6 = vld [vmem:[#allocation1] sm:$0x1]
    %vm7 = vcmask 31744
    %8 = vst.msk [vmem:[#allocation0] sm:$0x1] %vm7, %v6
    %v9 = vld [vmem:[#allocation1] sm:$0x1]
    %10 = vrot.lane.b32.xlu0 %v9, 124
    %v11 = vpop.permute.xlu0 %10
    %vm12 = vcmask 31744
    %s13 = scalar_lea.vmem [#allocation0], 1
    %14 = vst.msk [vmem:[%s13] sm:$0x1] %vm12, %v11
    %s16 = ssub.s32 4, 1
    %v17 = vld [vmem:[#allocation0] sm:%s16]
    %s19 = ssub.s32 4, 1
    %20 = vst [vmem:[%s1] sm:%s19] %v17

// kernel: norm_act_conv.2
$region0: #{norm_act_conv.2}
  #allocation0 [shape = 'u32[]', space=smem, size = 0x4, offset = 0x4, fixed_abs, tag = 'smem constant byte address 0x4 - core index']
  #allocation1 [shape = 'u32[72,128]{1,0:T(1,128)}', space=vmem, size = 0x9000, scoped, tag = 'internal scratch']
  %s0 = inlined_call_operand.vmem [shape: f32[8,256], index: 0, kind: input, shape index: {}]
  %s1 = inlined_call_operand.vmem [shape: f32[8,1], index: 1, kind: output, shape index: {0}]
  %s2 = inlined_call_operand.vmem [shape: f32[8,1], index: 2, kind: output, shape index: {1}]
  %3 = xla_tuple %s1, %s2
  %s4 = sld [smem:[#allocation0]]
  $region22: #{norm_act_conv.2} parent=0
    _
  %s6 = ssub.s32 1, %s4
  %s7 = scalar_select 0, %s6, %s4
  // Predicated region
  $region2: #{norm_act_conv.2} parent=0 // pred_check
    _
  $region3: #{norm_act_conv.2} parent=0 // pred_check_branch
    %9 = sbr.rel (0) target = $region5
  $region4: #{norm_act_conv.2} parent=0 // pred_region
    _
  $region5: #{norm_act_conv.2} parent=0 // pred_fallthru
    _
  %v10 = vld [vmem:[%s0] sm:$0xff]
  %v11 = vld [vmem:[%s0 + $0x8] sm:$0xff]
  %v12 = vadd.f32 %v10, %v11
  %13 = vadd.xlane.f32.xlu0 %v12
  %v14 = vpop.xlane.xlu0 %13
  %v15 = vmul.f32 %v14, 0.00390625
  %v16 = vsub.f32 %v10, %v15
  %v17 = vsub.f32 %v11, %v15
  %v18 = vmul.f32 %v16, %v16
  %v19 = vmul.f32 %v17, %v17
  %v20 = vadd.f32 %v18, %v19
  %21 = vadd.xlane.f32.xlu0 %v20
  %v22 = vpop.xlane.xlu0 %21
  %v23 = vmul.f32 %v22, 0.00390625
  %vm24 = vcmask 7168
  %25 = vst.msk [vmem:[%s1] sm:$0xff] %vm24, %v15
  %v26 = vadd.f32 %v23, 1e-05
  %v27 = vrsqrt.pop %v26
  %v28 = vmul.f32 %v27, %v26
  %v29 = vmul.f32 %v28, %v27
  %v30 = vmul.f32 0.5, %v29
  %v31 = vsub.f32 1.5, %v30
  %v32 = vmul.f32 %v27, %v31
  %vm33 = vweird.f32 %v26
  %vm34 = vweird.f32 %v27
  %vm35 = vmor %vm33, %vm34
  %v36 = vsel %vm35, %v27, %v32
  %37 = vst.msk [vmem:[%s2] sm:$0xff] %vm24, %v36
  // Predicated region
  $region6: #{norm_act_conv.2} parent=0 // pred_check
    _
  $region7: #{norm_act_conv.2} parent=0 // pred_check_branch
    %39 = sbr.rel (0) target = $region9
  $region8: #{norm_act_conv.2} parent=0 // pred_region
    _
  $region9: #{norm_act_conv.2} parent=0 // pred_fallthru
    _
  // Predicated region
  $region10: #{norm_act_conv.2} parent=0 // pred_check
    _
  $region11: #{norm_act_conv.2} parent=0 // pred_check_branch
    %41 = sbr.rel (0) target = $region13
  $region12: #{norm_act_conv.2} parent=0 // pred_region
    _
  $region13: #{norm_act_conv.2} parent=0 // pred_fallthru
    _
  // Predicated region
  $region14: #{norm_act_conv.2} parent=0 // pred_check
    _
  $region15: #{norm_act_conv.2} parent=0 // pred_check_branch
    %43 = sbr.rel (0) target = $region17
  $region16: #{norm_act_conv.2} parent=0 // pred_region
    _
  $region17: #{norm_act_conv.2} parent=0 // pred_fallthru
    _
  // Predicated region
  $region18: #{norm_act_conv.2} parent=0 // pred_check
    _
  $region19: #{norm_act_conv.2} parent=0 // pred_check_branch
    %45 = sbr.rel (0) target = $region21
  $region20: #{norm_act_conv.2} parent=0 // pred_region
    _
  $region21: #{norm_act_conv.2} parent=0 // pred_fallthru
    _

// kernel: norm_act_conv.3
$region0: #{norm_act_conv.3}
  #allocation0 [shape = 'u32[]', space=smem, size = 0x4, offset = 0x4, fixed_abs, tag = 'smem constant byte address 0x4 - core index']
  #allocation1 [shape = 'u32[72,128]{1,0:T(1,128)}', space=vmem, size = 0x9000, scoped, tag = 'internal scratch']
  #allocation2 [shape = 'bf16[64,256]{1,0:T(8,128)(2,1)}', space=vmem, size = 0x8000, scoped, tag = 'scratch operand']
  #allocation3 [shape = 'bf16[144,128]{1,0:T(8,128)(2,1)}', space=vmem, size = 0x9000, scoped, tag = 'scratch operand']
  %s0 = inlined_call_operand.vmem [shape: bf16[2,64,256], index: 0, kind: input, shape index: {}]
  %s1 = inlined_call_operand.vmem [shape: f32[2,64,1], index: 1, kind: input, shape index: {}]
  %s2 = inlined_call_operand.vmem [shape: bf16[8,144], index: 2, kind: input, shape index: {}]
  %s3 = inlined_call_operand.vmem [shape: f32[8,1], index: 3, kind: input, shape index: {}]
  %s4 = inlined_call_operand.vmem [shape: f32[2,8,128], index: 4, kind: output, shape index: {}]
  %s5 = sld [smem:[#allocation0]]
  $region49: #{norm_act_conv.3} parent=0
    _
  %s7 = ssub.s32 1, %s5
  %s8 = scalar_select 0, %s7, %s5
  loop: start=0, step=1, limit=4
  $region2: #{norm_act_conv.3} parent=0 // loop_pre_header
    _
  $region3: #{norm_act_conv.3} parent=0 // loop_header
    %s10 = sphi 0, %s14
    %p11 = scmp.ge.s32.totalorder %s10, 4
    %s17 = sphi 0, %s29
    %s18 = sphi 0, %s25
    %s19 = sphi 0, %s17
    %s20 = sphi 0, %s18
    %s21 = sphi 0, %s19
    %s22 = sphi 0, %s20
    %s32 = sphi 0, %s34
    %s35 = sphi 0, %s32
    %s36 = sphi 0, %s35
    %s52 = sphi 0, %s36
    %s58 = sphi 0, %s60
    %s61 = sphi 0, %s58
    %s62 = sphi 0, %s61
    %s78 = sphi 0, %s62
    %s82 = sphi 0, %s82
    %s84 = sphi 0, %s82
    %s85 = sphi 0, %s84
    %s99 = sphi 0, %s85
    %s103 = sphi 0, %s103
    %s105 = sphi 0, %s103
    %s106 = sphi 0, %s105
    %s120 = sphi 0, %s106
    %s128 = sphi 0, %s130
    %s131 = sphi 0, %s128
    %s132 = sphi 0, %s131
    %s148 = sphi 0, %s132
  $region4: #{norm_act_conv.3} parent=0 // loop_header_branch
    %13 = sbr.rel (%p11) target = $region8
  $region5: #{norm_act_conv.3} parent=0 // loop_body
    %s15 = ssub.s32 %s10, 1
    %s16 = ssub.s32 %s10, 2
    %s23 = sadd.s32 1, %s18
    %p24 = scmp.ge.s32.totalorder %s23, 1
    %s25 = scalar_select %p24, 0, %s23
    %s26 = sadd.s32 1, %s17
    %s27 = scalar_select %p24, %s26, %s17
    %p28 = scmp.ge.s32.totalorder %s27, 2
    %s29 = scalar_select %p28, 0, %s27
    %s30 = ssub.s32 %s17, %s29
    %p31 = scmp.eq.s32.totalorder %s30, 0
    %s33 = sadd.s32 %s32, 1
    %s34 = scalar_select %p31, %s32, %s33
    %p37 = pneg %p31
    %p38 = scmp.eq.s32.totalorder %s10, 1
    %p39 = por %p37, %p38
    %p40 = scmp.ne.s32.totalorder %s32, %s35
    %p41 = scmp.eq.s32.totalorder %s10, 0
    %p42 = por %p40, %p41
    %p43 = scmp.ne.s32.totalorder %s32, %s35
    %p44 = scmp.eq.s32.totalorder %s15, 1
    %p45 = por %p43, %p44
    %p46 = scmp.ne.s32.totalorder %s35, %s36
    %p47 = scmp.eq.s32.totalorder %s15, 0
    %p48 = por %p46, %p47
    %p49 = scmp.ne.s32.totalorder %s35, %s36
    %p50 = scmp.eq.s32.totalorder %s16, 1
    %p51 = por %p49, %p50
    %p53 = scmp.ne.s32.totalorder %s36, %s52
    %p54 = scmp.eq.s32.totalorder %s16, 0
    %p55 = por %p53, %p54
    %s56 = ssub.s32 %s17, %s29
    %p57 = scmp.eq.s32.totalorder %s56, 0
    %s59 = sadd.s32 %s58, 1
    %s60 = scalar_select %p57, %s58, %s59
    %p63 = pneg %p57
    %p64 = scmp.eq.s32.totalorder %s10, 1
    %p65 = por %p63, %p64
    %p66 = scmp.ne.s32.totalorder %s58, %s61
    %p67 = scmp.eq.s32.totalorder %s10, 0
    %p68 = por %p66, %p67
    %p69 = scmp.ne.s32.totalorder %s58, %s61
    %p70 = scmp.eq.s32.totalorder %s15, 1
    %p71 = por %p69, %p70
    %p72 = scmp.ne.s32.totalorder %s61, %s62
    %p73 = scmp.eq.s32.totalorder %s15, 0
    %p74 = por %p72, %p73
    %p75 = scmp.ne.s32.totalorder %s61, %s62
    %p76 = scmp.eq.s32.totalorder %s16, 1
    %p77 = por %p75, %p76
    %p79 = scmp.ne.s32.totalorder %s62, %s78
    %p80 = scmp.eq.s32.totalorder %s16, 0
    %p81 = por %p79, %p80
    %s83 = sadd.s32 %s82, 1
    %p86 = scmp.eq.s32.totalorder %s10, 1
    %p87 = scmp.ne.s32.totalorder %s82, %s84
    %p88 = scmp.eq.s32.totalorder %s10, 0
    %p89 = por %p87, %p88
    %p90 = scmp.ne.s32.totalorder %s82, %s84
    %p91 = scmp.eq.s32.totalorder %s15, 1
    %p92 = por %p90, %p91
    %p93 = scmp.ne.s32.totalorder %s84, %s85
    %p94 = scmp.eq.s32.totalorder %s15, 0
    %p95 = por %p93, %p94
    %p96 = scmp.ne.s32.totalorder %s84, %s85
    %p97 = scmp.eq.s32.totalorder %s16, 1
    %p98 = por %p96, %p97
    %p100 = scmp.ne.s32.totalorder %s85, %s99
    %p101 = scmp.eq.s32.totalorder %s16, 0
    %p102 = por %p100, %p101
    %s104 = sadd.s32 %s103, 1
    %p107 = scmp.eq.s32.totalorder %s10, 1
    %p108 = scmp.ne.s32.totalorder %s103, %s105
    %p109 = scmp.eq.s32.totalorder %s10, 0
    %p110 = por %p108, %p109
    %p111 = scmp.ne.s32.totalorder %s103, %s105
    %p112 = scmp.eq.s32.totalorder %s15, 1
    %p113 = por %p111, %p112
    %p114 = scmp.ne.s32.totalorder %s105, %s106
    %p115 = scmp.eq.s32.totalorder %s15, 0
    %p116 = por %p114, %p115
    %p117 = scmp.ne.s32.totalorder %s105, %s106
    %p118 = scmp.eq.s32.totalorder %s16, 1
    %p119 = por %p117, %p118
    %p121 = scmp.ne.s32.totalorder %s106, %s120
    %p122 = scmp.eq.s32.totalorder %s16, 0
    %p123 = por %p121, %p122
    %s124 = ssub.s32 %s17, %s29
    %s125 = ssub.s32 %s18, %s25
    %s126 = sor.u32 %s124, %s125
    %p127 = scmp.eq.s32.totalorder %s126, 0
    %s129 = sadd.s32 %s128, 1
    %s130 = scalar_select %p127, %s128, %s129
    %p133 = pneg %p127
    %p134 = scmp.eq.s32.totalorder %s10, 1
    %p135 = por %p133, %p134
    %p136 = scmp.ne.s32.totalorder %s128, %s131
    %p137 = scmp.eq.s32.totalorder %s10, 0
    %p138 = por %p136, %p137
    %p139 = scmp.ne.s32.totalorder %s128, %s131
    %p140 = scmp.eq.s32.totalorder %s15, 1
    %p141 = por %p139, %p140
    %p142 = scmp.ne.s32.totalorder %s131, %s132
    %p143 = scmp.eq.s32.totalorder %s15, 0
    %p144 = por %p142, %p143
    %p145 = scmp.ne.s32.totalorder %s131, %s132
    %p146 = scmp.eq.s32.totalorder %s16, 1
    %p147 = por %p145, %p146
    %p149 = scmp.ne.s32.totalorder %s132, %s148
    %p150 = scmp.eq.s32.totalorder %s16, 0
    %p151 = por %p149, %p150
    %p152 = scmp.le.s32.totalorder 1, %s10
    %p153 = scmp.lt.s32.totalorder %s10, 3
    %p154 = pnand %p152, %p153
    %p155 = pneg %p154
    // Predicated region
    $region9: #{norm_act_conv.3} parent=5 // pred_check
      _
    $region10: #{norm_act_conv.3} parent=5 // pred_check_branch
      %157 = sbr.rel (%p154) target = $region12
    $region11: #{norm_act_conv.3} parent=5 // pred_region
      %s158 = ssub.s32 %s10, 1
      // Predicated region
      $region13: #{norm_act_conv.3} parent=11 // pred_check
        %p159 = pneg %p95
      $region14: #{norm_act_conv.3} parent=11 // pred_check_branch
        %161 = sbr.rel (%p159) target = $region16
      $region15: #{norm_act_conv.3} parent=11 // pred_region
        _
      $region16: #{norm_act_conv.3} parent=11 // pred_fallthru
        _
      // Predicated region
      $region17: #{norm_act_conv.3} parent=11 // pred_check
        %p162 = pneg %p116
      $region18: #{norm_act_conv.3} parent=11 // pred_check_branch
        %164 = sbr.rel (%p162) target = $region20
      $region19: #{norm_act_conv.3} parent=11 // pred_region
        _
      $region20: #{norm_act_conv.3} parent=11 // pred_fallthru
        _
    $region12: #{norm_act_conv.3} parent=5 // pred_fallthru
      _
    %p165 = scmp.lt.s32.totalorder %s10, 2
    // Predicated region
    $region21: #{norm_act_conv.3} parent=5 // pred_check
      %p166 = pneg %p165
    $region22: #{norm_act_conv.3} parent=5 // pred_check_branch
      %168 = sbr.rel (%p166) target = $region24
    $region23: #{norm_act_conv.3} parent=5 // pred_region
      // Predicated region
      $region25: #{norm_act_conv.3} parent=23 // pred_check
        %p169 = pneg %p42
      $region26: #{norm_act_conv.3} parent=23 // pred_check_branch
        %171 = sbr.rel (%p169) target = $region28
      $region27: #{norm_act_conv.3} parent=23 // pred_region
        %p172 = scmp.lt.s32.totalorder %s17, 1
        %s173 = scalar_select %p172, %s17, 1
        %s174 = smul.addr %s173, 16
        %s175 = smul.addr %s174, 4
        %s176 = scalar_lea.vmem %s0, %s175
      $region28: #{norm_act_conv.3} parent=23 // pred_fallthru
        _
      // Predicated region
      $region29: #{norm_act_conv.3} parent=23 // pred_check
        %p177 = pneg %p68
      $region30: #{norm_act_conv.3} parent=23 // pred_check_branch
        %179 = sbr.rel (%p177) target = $region32
      $region31: #{norm_act_conv.3} parent=23 // pred_region
        %p180 = scmp.lt.s32.totalorder %s17, 1
        %s181 = scalar_select %p180, %s17, 1
        %s182 = smul.addr %s181, 8
        %s183 = smul.addr %s182, 8
        %s184 = scalar_lea.vmem %s1, %s183
      $region32: #{norm_act_conv.3} parent=23 // pred_fallthru
        _
    $region24: #{norm_act_conv.3} parent=5 // pred_fallthru
      _
    %p185 = scmp.le.s32.totalorder 1, %s10
    %p186 = scmp.lt.s32.totalorder %s10, 3
    %p187 = pnand %p185, %p186
    %p188 = pneg %p187
    // Predicated region
    $region33: #{norm_act_conv.3} parent=5 // pred_check
      _
    $region34: #{norm_act_conv.3} parent=5 // pred_check_branch
      %190 = sbr.rel (%p187) target = $region36
    $region35: #{norm_act_conv.3} parent=5 // pred_region
      %s191 = ssub.s32 %s10, 1
      %p192 = scmp.lt.s32.totalorder %s19, 1
      %s193 = scalar_select %p192, %s19, 1
      %s194 = smul.addr %s193, 16
      %s195 = smul.addr %s194, 4
      %s196 = scalar_lea.vmem %s0, %s195
      %p197 = pneg %p48
      %p198 = pneg %p45
      %p199 = scmp.lt.s32.totalorder %s19, 1
      %s200 = scalar_select %p199, %s19, 1
      %s201 = smul.addr %s200, 8
      %s202 = smul.addr %s201, 8
      %s203 = scalar_lea.vmem %s1, %s202
      %p204 = pneg %p74
      %p205 = pneg %p71
      %p206 = pneg %p95
      %p207 = pneg %p92
      %p208 = pneg %p116
      %p209 = pneg %p113
      %p210 = pneg %p144
      %p211 = pneg %p141
      %p212 = scmp.lt.s32.totalorder %s19, 1
      %s213 = scalar_select %p212, %s19, 1
      %p214 = scmp.lt.s32.totalorder %s20, 0
      %s215 = scalar_select %p214, %s20, 0
      %s216 = sadd.s32 %s215, %s213
      %s217 = smul.addr %s216, 8
      %s218 = scalar_lea.vmem %s4, %s217
      %p219 = scmp.lt.s32.totalorder %s19, 1
      %s220 = scalar_select %p219, %s19, 1
      %s221 = smul.addr %s220, 16
      %s222 = smul.addr %s221, 4
      %s223 = scalar_lea.vmem %s0, %s222
      %p224 = scmp.lt.s32.totalorder %s19, 1
      %s225 = scalar_select %p224, %s19, 1
      %s226 = smul.addr %s225, 8
      %s227 = smul.addr %s226, 8
      %s228 = scalar_lea.vmem %s1, %s227
      %p229 = scmp.lt.s32.totalorder %s19, 1
      %s230 = scalar_select %p229, %s19, 1
      %p231 = scmp.lt.s32.totalorder %s20, 0
      %s232 = scalar_select %p231, %s20, 0
      %s233 = sadd.s32 %s232, %s230
      %s234 = smul.addr %s233, 8
      %s235 = scalar_lea.vmem %s4, %s234
      %s237 = smul.u32 %s20, 128
      %s238 = sshra.s32 %s237, 7
      %s239 = sand.u32 %s237, 127
      %s240 = smul.addr %s238, 4
      %s241 = scalar_lea.vmem %s223, %s240
      %v242 = vld [vmem:[%s241] sm:$0xff]
      %v243 = vld [vmem:[%s241 + $0x8] sm:$0xff]
      %v244 = vld [vmem:[%s241 + $0x10] sm:$0xff]
      %v245 = vld [vmem:[%s241 + $0x18] sm:$0xff]
      %v246 = vld [vmem:[%s241 + $0x20] sm:$0xff]
      %v247 = vld [vmem:[%s241 + $0x28] sm:$0xff]
      %v248 = vld [vmem:[%s241 + $0x30] sm:$0xff]
      %v249 = vld [vmem:[%s241 + $0x38] sm:$0xff]
      %v250 = vunpack.c.l.bf16 %v242
      %v251 = vunpack.c.h.bf16 %v242
      %v252 = vunpack.c.l.bf16 %v243
      %v253 = vunpack.c.h.bf16 %v243
      %v254 = vunpack.c.l.bf16 %v244
      %v255 = vunpack.c.h.bf16 %v244
      %v256 = vunpack.c.l.bf16 %v245
      %v257 = vunpack.c.h.bf16 %v245
      %v258 = vunpack.c.l.bf16 %v246
      %v259 = vunpack.c.h.bf16 %v246
      %v260 = vunpack.c.l.bf16 %v247
      %v261 = vunpack.c.h.bf16 %v247
      %v262 = vunpack.c.l.bf16 %v248
      %v263 = vunpack.c.h.bf16 %v248
      %v264 = vunpack.c.l.bf16 %v249
      %v265 = vunpack.c.h.bf16 %v249
      %v266 = vld [vmem:[%s228] sm:$0xff]
      %v267 = vld [vmem:[%s228 + $0x8] sm:$0xff]
      %v268 = vld [vmem:[%s228 + $0x10] sm:$0xff]
      %v269 = vld [vmem:[%s228 + $0x18] sm:$0xff]
      %v270 = vld [vmem:[%s228 + $0x20] sm:$0xff]
      %v271 = vld [vmem:[%s228 + $0x28] sm:$0xff]
      %v272 = vld [vmem:[%s228 + $0x30] sm:$0xff]
      %v273 = vld [vmem:[%s228 + $0x38] sm:$0xff]
      %275 = vset.pattern.permute.xlu0 0
      %276 = vperm.xlu0 %275, %v266
      %v277 = vpop.permute.xlu0 %276
      %280 = vset.pattern.permute.xlu0 0
      %281 = vperm.xlu0 %280, %v267
      %v282 = vpop.permute.xlu0 %281
      %285 = vset.pattern.permute.xlu0 0
      %286 = vperm.xlu0 %285, %v268
      %v287 = vpop.permute.xlu0 %286
      %290 = vset.pattern.permute.xlu0 0
      %291 = vperm.xlu0 %290, %v269
      %v292 = vpop.permute.xlu0 %291
      %295 = vset.pattern.permute.xlu0 0
      %296 = vperm.xlu0 %295, %v270
      %v297 = vpop.permute.xlu0 %296
      %300 = vset.pattern.permute.xlu0 0
      %301 = vperm.xlu0 %300, %v271
      %v302 = vpop.permute.xlu0 %301
      %305 = vset.pattern.permute.xlu0 0
      %306 = vperm.xlu0 %305, %v272
      %v307 = vpop.permute.xlu0 %306
      %310 = vset.pattern.permute.xlu0 0
      %311 = vperm.xlu0 %310, %v273
      %v312 = vpop.permute.xlu0 %311
      %v314 = vmul.f32 %v250, %v277
      %v315 = vmul.f32 %v251, %v277
      %v316 = vmul.f32 %v252, %v282
      %v317 = vmul.f32 %v253, %v282
      %v318 = vmul.f32 %v254, %v287
      %v319 = vmul.f32 %v255, %v287
      %v320 = vmul.f32 %v256, %v292
      %v321 = vmul.f32 %v257, %v292
      %v322 = vmul.f32 %v258, %v297
      %v323 = vmul.f32 %v259, %v297
      %v324 = vmul.f32 %v260, %v302
      %v325 = vmul.f32 %v261, %v302
      %v326 = vmul.f32 %v262, %v307
      %v327 = vmul.f32 %v263, %v307
      %v328 = vmul.f32 %v264, %v312
      %v329 = vmul.f32 %v265, %v312
      %vm330 = vcmp.ge.f32.partialorder %v314, 0.0
      %vm331 = vcmp.ge.f32.partialorder %v315, 0.0
      %vm332 = vcmp.ge.f32.partialorder %v316, 0.0
      %vm333 = vcmp.ge.f32.partialorder %v317, 0.0
      %vm334 = vcmp.ge.f32.partialorder %v318, 0.0
      %vm335 = vcmp.ge.f32.partialorder %v319, 0.0
      %vm336 = vcmp.ge.f32.partialorder %v320, 0.0
      %vm337 = vcmp.ge.f32.partialorder %v321, 0.0
      %vm338 = vcmp.ge.f32.partialorder %v322, 0.0
      %vm339 = vcmp.ge.f32.partialorder %v323, 0.0
      %vm340 = vcmp.ge.f32.partialorder %v324, 0.0
      %vm341 = vcmp.ge.f32.partialorder %v325, 0.0
      %vm342 = vcmp.ge.f32.partialorder %v326, 0.0
      %vm343 = vcmp.ge.f32.partialorder %v327, 0.0
      %vm344 = vcmp.ge.f32.partialorder %v328, 0.0
      %vm345 = vcmp.ge.f32.partialorder %v329, 0.0
      %v346 = vmul.f32 %v314, 0.2
      %v347 = vmul.f32 %v315, 0.2
      %v348 = vmul.f32 %v316, 0.2
      %v349 = vmul.f32 %v317, 0.2
      %v350 = vmul.f32 %v318, 0.2
      %v351 = vmul.f32 %v319, 0.2
      %v352 = vmul.f32 %v320, 0.2
      %v353 = vmul.f32 %v321, 0.2
      %v354 = vmul.f32 %v322, 0.2
      %v355 = vmul.f32 %v323, 0.2
      %v356 = vmul.f32 %v324, 0.2
      %v357 = vmul.f32 %v325, 0.2
      %v358 = vmul.f32 %v326, 0.2
      %v359 = vmul.f32 %v327, 0.2
      %v360 = vmul.f32 %v328, 0.2
      %v361 = vmul.f32 %v329, 0.2
      %v362 = vsel %vm330, %v314, %v346
      %v363 = vsel %vm331, %v315, %v347
      %v364 = vsel %vm332, %v316, %v348
      %v365 = vsel %vm333, %v317, %v349
      %v366 = vsel %vm334, %v318, %v350
      %v367 = vsel %vm335, %v319, %v351
      %v368 = vsel %vm336, %v320, %v352
      %v369 = vsel %vm337, %v321, %v353
      %v370 = vsel %vm338, %v322, %v354
      %v371 = vsel %vm339, %v323, %v355
      %v372 = vsel %vm340, %v324, %v356
      %v373 = vsel %vm341, %v325, %v357
      %v374 = vsel %vm342, %v326, %v358
      %v375 = vsel %vm343, %v327, %v359
      %v376 = vsel %vm344, %v328, %v360
      %v377 = vsel %vm345, %v329, %v361
      %v378 = vpack.c.bf16 %v363, %v362
      %v379 = vpack.c.bf16 %v365, %v364
      %v380 = vpack.c.bf16 %v367, %v366
      %v381 = vpack.c.bf16 %v369, %v368
      %v382 = vpack.c.bf16 %v371, %v370
      %v383 = vpack.c.bf16 %v373, %v372
      %v384 = vpack.c.bf16 %v375, %v374
      %v385 = vpack.c.bf16 %v377, %v376
      %386 = vst [vmem:[#allocation2] sm:$0xff] %v378
      %387 = vst [vmem:[#allocation2 + $0x8] sm:$0xff] %v379
      %388 = vst [vmem:[#allocation2 + $0x10] sm:$0xff] %v380
      %389 = vst [vmem:[#allocation2 + $0x18] sm:$0xff] %v381
      %390 = vst [vmem:[#allocation2 + $0x20] sm:$0xff] %v382
      %391 = vst [vmem:[#allocation2 + $0x28] sm:$0xff] %v383
      %392 = vst [vmem:[#allocation2 + $0x30] sm:$0xff] %v384
      %393 = vst [vmem:[#allocation2 + $0x38] sm:$0xff] %v385
      %v394 = vld [vmem:[#allocation2] sm:$0xf]
      %v395 = vld [vmem:[#allocation2 + $0x8] sm:$0xf]
      %396 = vst [vmem:[#allocation3] sm:$0xf] %v394
      %397 = vst [vmem:[#allocation3 + $0x4] sm:$0xf] %v395
      %v398 = vld [vmem:[#allocation2 + $0x10] sm:$0xf]
      %v399 = vld [vmem:[#allocation2 + $0x18] sm:$0xf]
      %400 = vst [vmem:[#allocation3 + $0x8] sm:$0xf] %v398
      %401 = vst [vmem:[#allocation3 + $0xc] sm:$0xf] %v399
      %v402 = vld [vmem:[#allocation2] sm:$0xff]
      %v403 = vld [vmem:[#allocation2 + $0x8] sm:$0xff]
      %406 = vrot.lane.b32.xlu0 %v402, 127
      %v407 = vpop.permute.xlu0 %406
      %408 = vrot.lane.b32.xlu0 %v403, 127
      %v409 = vpop.permute.xlu0 %408
      %v410 = vrot.slane %v407, 4
      %v411 = vrot.slane %v409, 4
      %vm412 = vcmask 1039360
      %v413 = vsel %vm412, %v407, %v410
      %v414 = vsel %vm412, %v409, %v411
      %417 = vst [vmem:[#allocation3 + $0x10] sm:$0xf] %v413
      %418 = vst [vmem:[#allocation3 + $0x14] sm:$0xf] %v414
      %v419 = vld [vmem:[#allocation2 + $0x20] sm:$0xf]
      %v420 = vld [vmem:[#allocation2 + $0x28] sm:$0xf]
      %421 = vst [vmem:[#allocation3 + $0x18] sm:$0xf] %v419
      %422 = vst [vmem:[#allocation3 + $0x1c] sm:$0xf] %v420
      %v423 = vld [vmem:[#allocation2 + $0x30] sm:$0xf]
      %v424 = vld [vmem:[#allocation2 + $0x38] sm:$0xf]
      %425 = vst [vmem:[#allocation3 + $0x20] sm:$0xf] %v423
      %426 = vst [vmem:[#allocation3 + $0x24] sm:$0xf] %v424
      %v427 = vld [vmem:[#allocation2 + $0x20] sm:$0xff]
      %v428 = vld [vmem:[#allocation2 + $0x28] sm:$0xff]
      %431 = vrot.lane.b32.xlu0 %v427, 127
      %v432 = vpop.permute.xlu0 %431
      %433 = vrot.lane.b32.xlu0 %v428, 127
      %v434 = vpop.permute.xlu0 %433
      %v435 = vrot.slane %v432, 4
      %v436 = vrot.slane %v434, 4
      %v437 = vsel %vm412, %v432, %v435
      %v438 = vsel %vm412, %v434, %v436
      %441 = vst [vmem:[#allocation3 + $0x28] sm:$0xf] %v437
      %442 = vst [vmem:[#allocation3 + $0x2c] sm:$0xf] %v438
      %v443 = vld [vmem:[#allocation2] sm:$0xff]
      %v444 = vld [vmem:[#allocation2 + $0x8] sm:$0xff]
      %447 = vrot.lane.b32.xlu0 %v443, 119
      %v448 = vpop.permute.xlu0 %447
      %449 = vrot.lane.b32.xlu0 %v444, 119
      %v450 = vpop.permute.xlu0 %449
      %v451 = vrot.slane %v448, 4
      %v452 = vrot.slane %v450, 4
      %vm453 = vcmask 973824
      %v454 = vsel %vm453, %v448, %v451
      %v455 = vsel %vm453, %v450, %v452
      %458 = vst [vmem:[#allocation3 + $0x30] sm:$0xf] %v454
      %459 = vst [vmem:[#allocation3 + $0x34] sm:$0xf] %v455
      %v460 = vld [vmem:[#allocation2 + $0x10] sm:$0xff]
      %v461 = vld [vmem:[#allocation2 + $0x18] sm:$0xff]
      %464 = vrot.lane.b32.xlu0 %v460, 119
      %v465 = vpop.permute.xlu0 %464
      %466 = vrot.lane.b32.xlu0 %v461, 119
      %v467 = vpop.permute.xlu0 %466
      %v468 = vrot.slane %v465, 4
      %v469 = vrot.slane %v467, 4
      %v470 = vsel %vm453, %v465, %v468
      %v471 = vsel %vm453, %v467, %v469
      %474 = vst [vmem:[#allocation3 + $0x38] sm:$0xf] %v470
      %475 = vst [vmem:[#allocation3 + $0x3c] sm:$0xf] %v471
      %v476 = vld [vmem:[#allocation2] sm:$0xff]
      %v477 = vld [vmem:[#allocation2 + $0x8] sm:$0xff]
      %480 = vrot.lane.b32.xlu0 %v476, 118
      %v481 = vpop.permute.xlu0 %480
      %482 = vrot.lane.b32.xlu0 %v477, 118
      %v483 = vpop.permute.xlu0 %482
      %v484 = vrot.slane %v481, 4
      %v485 = vrot.slane %v483, 4
      %vm486 = vcmask 965632
      %v487 = vsel %vm486, %v481, %v484
      %v488 = vsel %vm486, %v483, %v485
      %491 = vst [vmem:[#allocation3 + $0x40] sm:$0xf] %v487
      %492 = vst [vmem:[#allocation3 + $0x44] sm:$0xf] %v488
      %v493 = vld [vmem:[%s2] sm:$0xff]
      %v494 = vld [vmem:[#allocation3] sm:$0xf]
      %v495 = vld [vmem:[#allocation3 + $0x4] sm:$0xf]
      %v496 = vld [vmem:[#allocation3 + $0x8] sm:$0xf]
      %v497 = vld [vmem:[#allocation3 + $0xc] sm:$0xf]
      %v498 = vld [vmem:[#allocation3 + $0x10] sm:$0xf]
      %v499 = vld [vmem:[#allocation3 + $0x14] sm:$0xf]
      %v500 = vld [vmem:[#allocation3 + $0x18] sm:$0xf]
      %v501 = vld [vmem:[#allocation3 + $0x1c] sm:$0xf]
      %v502 = vld [vmem:[#allocation3 + $0x20] sm:$0xf]
      %v503 = vld [vmem:[#allocation3 + $0x24] sm:$0xf]
      %v504 = vld [vmem:[#allocation3 + $0x28] sm:$0xf]
      %v505 = vld [vmem:[#allocation3 + $0x2c] sm:$0xf]
      %v506 = vld [vmem:[#allocation3 + $0x30] sm:$0xf]
      %v507 = vld [vmem:[#allocation3 + $0x34] sm:$0xf]
      %v508 = vld [vmem:[#allocation3 + $0x38] sm:$0xf]
      %v509 = vld [vmem:[#allocation3 + $0x3c] sm:$0xf]
      %v510 = vld [vmem:[#allocation3 + $0x40] sm:$0xf]
      %v511 = vld [vmem:[#allocation3 + $0x44] sm:$0xf]
      %v512 = vld [vmem:[%s3] sm:$0xff]
      %514 = vset.pattern.permute.xlu0 0
      %515 = vperm.xlu0 %514, %v512
      %v516 = vpop.permute.xlu0 %515
      %v519 = vunpack.c.l.b16 %v493
      %v520 = vunpack.c.h.b16 %v493
      %v521 = vpack.c.b16 %v519, %v519
      %v522 = vpack.c.b16 %v520, %v520
      %v542 = vunpack.c.l.b16 %v494
      %v543 = vunpack.c.l.b16 %v495
      %v544 = vunpack.c.l.b16 %v496
      %v545 = vunpack.c.l.b16 %v497
      %v546 = vunpack.c.l.b16 %v498
      %v547 = vunpack.c.l.b16 %v499
      %v548 = vunpack.c.l.b16 %v500
      %v549 = vunpack.c.l.b16 %v501
      %v550 = vunpack.c.l.b16 %v502
      %v551 = vunpack.c.l.b16 %v503
      %v552 = vunpack.c.l.b16 %v504
      %v553 = vunpack.c.l.b16 %v505
      %v554 = vunpack.c.l.b16 %v506
      %v555 = vunpack.c.l.b16 %v507
      %v556 = vunpack.c.l.b16 %v508
      %v557 = vunpack.c.l.b16 %v509
      %v558 = vunpack.c.l.b16 %v510
      %v559 = vunpack.c.l.b16 %v511
      %v560 = vpack.c.b16 %v543, %v542
      %v561 = vpack.c.b16 %v545, %v544
      %v562 = vpack.c.b16 %v547, %v546
      %v563 = vpack.c.b16 %v549, %v548
      %v564 = vpack.c.b16 %v551, %v550
      %v565 = vpack.c.b16 %v553, %v552
      %v566 = vpack.c.b16 %v555, %v554
      %v567 = vpack.c.b16 %v557, %v556
      %v568 = vpack.c.b16 %v559, %v558
      %vm578 = vcmask 130048
      %v580 = vsel %vm578, %v522, 0
      %582 = vmatpush.bf16.msra.mxu0 %v567
      %583 = vmatpush.bf16.msra.mxu0 %v566
      %584 = vmatpush.bf16.msra.mxu0 %v565
      %585 = vmatpush.bf16.msra.mxu0 %v564
      %586 = vmatpush.bf16.msra.mxu0 %v563
      %587 = vmatpush.bf16.msra.mxu0 %v562
      %588 = vmatpush.bf16.msra.mxu0 %v561
      %589 = vmatpush.bf16.msra.mxu0 %v560
      %590 = vmatmul.bf16.gmra.mxu0 %v521
      %v591 = vpop.f32.mrf.mxu0
      %v592 = vadd.f32 %v516, %v591
      %v593 = vpop.f32.mrf.mxu0
      %594 = vdwg.mxu0
      %595 = vmatpush.bf16.msra.mxu0 0
      %596 = vmatpush.bf16.msra.mxu0 0
      %597 = vmatpush.bf16.msra.mxu0 0
      %598 = vmatpush.bf16.msra.mxu0 0
      %599 = vmatpush.bf16.msra.mxu0 0
      %600 = vmatpush.bf16.msra.mxu0 0
      %601 = vmatpush.bf16.msra.mxu0 0
      %602 = vmatpush.bf16.msra.mxu0 %v568
      %603 = vmatmul.bf16.gmra.mxu0 %v580
      %v604 = vpop.f32.mrf.mxu0
      %v605 = vadd.f32 %v592, %v604
      %v606 = vpop.f32.mrf.mxu0
      %607 = vdwg.mxu0
      %608 = vst [vmem:[%s235] sm:$0xff] %v605
      %p609 = scmp.lt.s32.totalorder %s19, 1
      %s610 = scalar_select %p609, %s19, 1
      %p611 = scmp.lt.s32.totalorder %s20, 0
      %s612 = scalar_select %p611, %s20, 0
      %s613 = sadd.s32 %s612, %s610
      %s614 = smul.addr %s613, 8
      %s615 = scalar_lea.vmem %s4, %s614
      // Predicated region
      $region37: #{norm_act_conv.3} parent=35 // pred_check
        %p616 = pneg %p141
      $region38: #{norm_act_conv.3} parent=35 // pred_check_branch
        %618 = sbr.rel (%p616) target = $region40
      $region39: #{norm_act_conv.3} parent=35 // pred_region
        _
      $region40: #{norm_act_conv.3} parent=35 // pred_fallthru
        _
    $region36: #{norm_act_conv.3} parent=5 // pred_fallthru
      _
    %p619 = scmp.le.s32.totalorder 2, %s10
    // Predicated region
    $region41: #{norm_act_conv.3} parent=5 // pred_check
      %p620 = pneg %p619
    $region42: #{norm_act_conv.3} parent=5 // pred_check_branch
      %622 = sbr.rel (%p620) target = $region44
    $region43: #{norm_act_conv.3} parent=5 // pred_region
      %s623 = ssub.s32 %s10, 2
      // Predicated region
      $region45: #{norm_act_conv.3} parent=43 // pred_check
        %p624 = pneg %p147
      $region46: #{norm_act_conv.3} parent=43 // pred_check_branch
        %626 = sbr.rel (%p624) target = $region48
      $region47: #{norm_act_conv.3} parent=43 // pred_region
        %p627 = scmp.lt.s32.totalorder %s21, 1
        %s628 = scalar_select %p627, %s21, 1
        %p629 = scmp.lt.s32.totalorder %s22, 0
        %s630 = scalar_select %p629, %s22, 0
        %s631 = sadd.s32 %s630, %s628
        %s632 = smul.addr %s631, 8
        %s633 = scalar_lea.vmem %s4, %s632
      $region48: #{norm_act_conv.3} parent=43 // pred_fallthru
        _
    $region44: #{norm_act_conv.3} parent=5 // pred_fallthru
      _
  $region6: #{norm_act_conv.3} parent=0 // loop_footer
    %s14 = sadd.s32 1, %s10
  $region7: #{norm_act_conv.3} parent=0 // loop_footer_branch
    %9 = sbr.rel target = $region3
  $region8: #{norm_act_conv.3} parent=0 // loop_exit
    _

</llo_original>
